<compile_context>
chip_gen: v7x
topology: tpu7x:2x2x1
jax: 0.10.0
libtpu: 0.0.40
codegen_flags: <defaults>
</compile_context>

<pallas_src>
import functools

import jax
import jax.numpy as jnp
from jax.experimental import pallas as pl
from jax.experimental.pallas import tpu as pltpu


_VMEM_LIMIT = 32 * 1024 * 1024  # safe on v5e/v6e/v7x; tiles here are ~1 MiB


def _round_up(x, m):
    return (x + m - 1) // m * m


def _pick_hw_tile(hw):
    """Fixed large lane tile: full HW when small, else 1024 (cdiv + masked tail)."""
    t = 1024
    return hw if hw <= t else t


# --------------------------- fused kernel ------------------------------------

def _fehead_kernel(x_ref, w_ref, b_ref, wv_ref, bl_ref,
                   ins_ref, seg_ref, cnt_ref, pool_ref,
                   *, out_chs, hw, thw):
    r = pl.program_id(1)
    nr = pl.num_programs(1)

    # Fused 1x1 convs: (Np, Cin) @ (Cin, thw) on the MXU, f32 accumulation,
    # bias add in the f32 epilogue. bf16 cast of the activation happens here.
    xb = x_ref[...].astype(jnp.bfloat16)
    acc = jnp.dot(w_ref[...], xb, preferred_element_type=jnp.float32)
    acc = acc + b_ref[...]                           # (Np, thw) + (Np, 1)

    # ins / seg heads: unpadded, contiguous leading-channel slices.
    ins_ref[...] = acc[:out_chs, :]
    seg_ref[...] = acc[out_chs:out_chs + 2, :]

    # Counter branch, part 1: masked global-average-pool accumulation.
    @pl.when(r == 0)
    def _():
        pool_ref[...] = jnp.zeros_like(pool_ref)

    col = r * thw + jax.lax.broadcasted_iota(jnp.int32, (1, thw), 1)
    valid = col < hw                                  # mask the ragged tail tile
    pool_ref[...] += jnp.sum(jnp.where(valid, acc, 0.0), axis=1, keepdims=True)

    # Counter branch, part 2 (finalize): mean -> Linear(out_chs->1) -> Sigmoid.
    @pl.when(r == nr - 1)
    def _():
        pooled = pool_ref[...] * (1.0 / hw)           # (Np, 1)
        z = jnp.sum(pooled * wv_ref[...], axis=0, keepdims=True) + bl_ref[...]
        cnt_ref[...] = 1.0 / (1.0 + jnp.exp(-z))


# --------------------------- parameters --------------------------------------

def make_fehead_params(key, in_chs, out_chs):
    ks = jax.random.split(key, 8)
    std_c = 1.0 / jnp.sqrt(jnp.float32(in_chs))
    std_l = 1.0 / jnp.sqrt(jnp.float32(out_chs))
    # Conv weights kept in PyTorch (out, in) orientation.
    w_ins = std_c * jax.random.normal(ks[0], (out_chs, in_chs), jnp.float32)
    b_ins = std_c * jax.random.normal(ks[1], (out_chs,), jnp.float32)
    w_seg = std_c * jax.random.normal(ks[2], (2, in_chs), jnp.float32)
    b_seg = std_c * jax.random.normal(ks[3], (2,), jnp.float32)
    w_cnt = std_c * jax.random.normal(ks[4], (out_chs, in_chs), jnp.float32)
    b_cnt = std_c * jax.random.normal(ks[5], (out_chs,), jnp.float32)
    w_lin = std_l * jax.random.normal(ks[6], (out_chs,), jnp.float32)
    b_lin = std_l * jax.random.normal(ks[7], (), jnp.float32)

    ct = out_chs + 2 + out_chs                        # ins | seg | counter-conv
    np_pad = _round_up(max(ct, 128), 128)             # MXU-friendly row count

    # Fused (Np, Cin) weight / (Np, 1) bias — built exactly ONCE at prep time.
    w_all = jnp.zeros((np_pad, in_chs), jnp.float32)
    w_all = w_all.at[:out_chs].set(w_ins)
    w_all = w_all.at[out_chs:out_chs + 2].set(w_seg)
    w_all = w_all.at[out_chs + 2:ct].set(w_cnt)
    b_all = jnp.zeros((np_pad, 1), jnp.float32)
    b_all = b_all.at[:out_chs, 0].set(b_ins)
    b_all = b_all.at[out_chs:out_chs + 2, 0].set(b_seg)
    b_all = b_all.at[out_chs + 2:ct, 0].set(b_cnt)
    # Linear weights scattered into the counter-conv channel rows (zeros elsewhere).
    w_vec = jnp.zeros((np_pad, 1), jnp.float32).at[out_chs + 2:ct, 0].set(w_lin)

    return {
        "w_all": w_all.astype(jnp.bfloat16),          # bf16 MXU operand
        "b_all": b_all,                               # f32 epilogue
        "w_vec": w_vec,
        "b_lin": b_lin.reshape(1, 1),
        "out_chs": out_chs,
        "np_pad": np_pad,
        # raw weights kept for the plain-JAX reference check in __main__
        "raw": (w_ins, b_ins, w_seg, b_seg, w_cnt, b_cnt, w_lin, b_lin),
    }


# --------------------------- forward ------------------------------------------

def fehead_forward(params, x_nchw):
    out_chs = params["out_chs"]
    np_pad = params["np_pad"]
    N, Cin, H, W = x_nchw.shape
    HW = H * W

    # NCHW-native: (N, Cin, H, W) -> (N, Cin, HW) is a free reshape.
    x3 = x_nchw.reshape(N, Cin, HW)

    thw = _pick_hw_tile(HW)
    n_hw = pl.cdiv(HW, thw)

    kernel = functools.partial(_fehead_kernel, out_chs=out_chs, hw=HW, thw=thw)

    ins3, seg3, cnt = pl.pallas_call(
        kernel,
        out_shape=(jax.ShapeDtypeStruct((N, out_chs, HW), jnp.float32),
                   jax.ShapeDtypeStruct((N, 2, HW), jnp.float32),
                   jax.ShapeDtypeStruct((N, 1, 1), jnp.float32)),
        grid=(N, n_hw),
        in_specs=[pl.BlockSpec((None, Cin, thw), lambda n, r: (n, 0, r)),
                  pl.BlockSpec((np_pad, Cin), lambda n, r: (0, 0)),
                  pl.BlockSpec((np_pad, 1), lambda n, r: (0, 0)),
                  pl.BlockSpec((np_pad, 1), lambda n, r: (0, 0)),
                  pl.BlockSpec((1, 1), lambda n, r: (0, 0))],
        out_specs=(pl.BlockSpec((None, out_chs, thw), lambda n, r: (n, 0, r)),
                   pl.BlockSpec((None, 2, thw), lambda n, r: (n, 0, r)),
                   pl.BlockSpec((None, 1, 1), lambda n, r: (n, 0, 0))),
        scratch_shapes=[pltpu.VMEM((np_pad, 1), jnp.float32)],
        compiler_params=pltpu.CompilerParams(
            dimension_semantics=("parallel", "arbitrary"),
            vmem_limit_bytes=_VMEM_LIMIT),
    )(x3, params["w_all"], params["b_all"], params["w_vec"], params["b_lin"])

    ins_head = ins3.reshape(N, out_chs, H, W)
    seg_head = seg3.reshape(N, 2, H, W)
    count = cnt.reshape(N, 1)
    return seg_head, ins_head, count


# --------------------------- main ---------------------------------------------

if __name__ == "__main__":
    in_chs, out_chs = 54, 36            # feHead / instanceSegmenationHead defaults
    N, H, W = 2, 16, 16

    params = make_fehead_params(jax.random.PRNGKey(1), in_chs, out_chs)
    x = jax.random.normal(jax.random.PRNGKey(0), (N, in_chs, H, W), jnp.float32)

    fwd = jax.jit(lambda inp: fehead_forward(params, inp))
    seg, ins, count = jax.block_until_ready(fwd(x))

    assert seg.shape == (N, 2, H, W), seg.shape
    assert ins.shape == (N, out_chs, H, W), ins.shape
    assert count.shape == (N, 1), count.shape
    assert bool(jnp.all(jnp.isfinite(seg)))
    assert bool(jnp.all(jnp.isfinite(ins)))
    assert bool(jnp.all((count > 0.0) & (count < 1.0)))

    # Plain-JAX f32 reference (loose tolerance: Pallas path uses bf16 operands).
    w_ins, b_ins, w_seg, b_seg, w_cnt, b_cnt, w_lin, b_lin = params["raw"]
    xh = x.reshape(N, in_chs, H * W)
    ref_ins = (jnp.einsum("oc,nch->noh", w_ins, xh)
               + b_ins[None, :, None]).reshape(N, out_chs, H, W)
    ref_seg = (jnp.einsum("oc,nch->noh", w_seg, xh)
               + b_seg[None, :, None]).reshape(N, 2, H, W)
    ref_cnn = (jnp.einsum("oc,nch->noh", w_cnt, xh)
               + b_cnt[None, :, None]).mean(axis=2)            # (N, out_chs)
    ref_cnt = (1.0 / (1.0 + jnp.exp(-(ref_cnn @ w_lin + b_lin))))[:, None]

    assert bool(jnp.max(jnp.abs(ins - ref_ins)) < 0.1)
    assert bool(jnp.max(jnp.abs(seg - ref_seg)) < 0.1)
    assert bool(jnp.max(jnp.abs(count - ref_cnt)) < 0.05)

    print("KERNEL_OK")
</pallas_src>

<mosaic_0001>
module attributes {stable_mosaic.version = 11 : i64} {
  func.func @_fehead_kernel(%arg0: i32, %arg1: i32, %arg2: memref<1x54x256xf32, #tpu.memory_space<vmem>>, %arg3: memref<128x54xbf16, #tpu.memory_space<vmem>>, %arg4: memref<128x1xf32, #tpu.memory_space<vmem>>, %arg5: memref<128x1xf32, #tpu.memory_space<vmem>>, %arg6: memref<1x1xf32, #tpu.memory_space<vmem>>, %arg7: memref<1x36x256xf32, #tpu.memory_space<vmem>>, %arg8: memref<1x2x256xf32, #tpu.memory_space<vmem>>, %arg9: memref<1x1x1xf32, #tpu.memory_space<vmem>>, %arg10: memref<128x1xf32, #tpu.memory_space<vmem>>) attributes {dimension_semantics = [#tpu.dimension_semantics<parallel>, #tpu.dimension_semantics<arbitrary>], iteration_bounds = array<i64: 2, 1>, scalar_prefetch = 0 : i64, scratch_operands = 1 : i64, tpu.core_type = #tpu.core_type<tc>, window_params = [{transform_indices = @transform_0, window_bounds = array<i64: 1, 54, 256>}, {pipeline_mode = #tpu.pipeline_mode<synchronous>, transform_indices = @transform_1, window_bounds = array<i64: 128, 54>}, {pipeline_mode = #tpu.pipeline_mode<synchronous>, transform_indices = @transform_2, window_bounds = array<i64: 128, 1>}, {pipeline_mode = #tpu.pipeline_mode<synchronous>, transform_indices = @transform_3, window_bounds = array<i64: 128, 1>}, {pipeline_mode = #tpu.pipeline_mode<synchronous>, transform_indices = @transform_4, window_bounds = array<i64: 1, 1>}, {transform_indices = @transform_5, window_bounds = array<i64: 1, 36, 256>}, {transform_indices = @transform_6, window_bounds = array<i64: 1, 2, 256>}, {transform_indices = @transform_7, window_bounds = array<i64: 1, 1, 1>}]} {
    %c0 = arith.constant 0 : index
    %c0_0 = arith.constant 0 : index
    %c0_1 = arith.constant 0 : index
    %0 = vector.load %arg2[%c0, %c0_0, %c0_1] : memref<1x54x256xf32, #tpu.memory_space<vmem>>, vector<1x54x256xf32>
    %1 = vector.shape_cast %0 : vector<1x54x256xf32> to vector<54x256xf32>
    %2 = arith.truncf %1 : vector<54x256xf32> to vector<54x256xbf16>
    %c0_2 = arith.constant 0 : index
    %c0_3 = arith.constant 0 : index
    %3 = vector.load %arg3[%c0_2, %c0_3] : memref<128x54xbf16, #tpu.memory_space<vmem>>, vector<128x54xbf16>
    %cst = arith.constant dense<0.000000e+00> : vector<128x256xf32>
    %4 = tpu.matmul %3, %2, %cst {dimension_numbers = #tpu.dot_dimension_numbers<[1], [0], [0], [1], [0, 0, 1, 1], [], []>} : vector<128x54xbf16>, vector<54x256xbf16>, vector<128x256xf32> -> vector<128x256xf32>
    %c0_4 = arith.constant 0 : index
    %c0_5 = arith.constant 0 : index
    %5 = vector.load %arg4[%c0_4, %c0_5] : memref<128x1xf32, #tpu.memory_space<vmem>>, vector<128x1xf32>
    %6 = vector.broadcast %5 : vector<128x1xf32> to vector<128x256xf32>
    %7 = arith.addf %4, %6 : vector<128x256xf32>
    %8 = vector.extract_strided_slice %7 {offsets = [0, 0], sizes = [36, 256], strides = [1, 1]} : vector<128x256xf32> to vector<36x256xf32>
    %c0_6 = arith.constant 0 : index
    %c0_7 = arith.constant 0 : index
    %c0_8 = arith.constant 0 : index
    %9 = vector.load %arg7[%c0_6, %c0_7, %c0_8] : memref<1x36x256xf32, #tpu.memory_space<vmem>>, vector<1x36x256xf32>
    %10 = vector.shape_cast %9 : vector<1x36x256xf32> to vector<36x256xf32>
    %11 = vector.shape_cast %8 : vector<36x256xf32> to vector<1x36x256xf32>
    tpu.vector_store %arg7[%c0_6, %c0_7, %c0_8], %11 {strides = array<i32>} : memref<1x36x256xf32, #tpu.memory_space<vmem>>, vector<1x36x256xf32>,
    %12 = vector.extract_strided_slice %7 {offsets = [36, 0], sizes = [2, 256], strides = [1, 1]} : vector<128x256xf32> to vector<2x256xf32>
    %c0_9 = arith.constant 0 : index
    %c0_10 = arith.constant 0 : index
    %c0_11 = arith.constant 0 : index
    %13 = vector.load %arg8[%c0_9, %c0_10, %c0_11] : memref<1x2x256xf32, #tpu.memory_space<vmem>>, vector<1x2x256xf32>
    %14 = vector.shape_cast %13 : vector<1x2x256xf32> to vector<2x256xf32>
    %15 = vector.shape_cast %12 : vector<2x256xf32> to vector<1x2x256xf32>
    tpu.vector_store %arg8[%c0_9, %c0_10, %c0_11], %15 {strides = array<i32>} : memref<1x2x256xf32, #tpu.memory_space<vmem>>, vector<1x2x256xf32>,
    %c0_i32 = arith.constant 0 : i32
    %16 = arith.cmpi eq, %arg1, %c0_i32 : i32
    %17 = arith.extui %16 : i1 to i32
    %c0_i32_12 = arith.constant 0 : i32
    %18 = arith.cmpi ne, %17, %c0_i32_12 : i32
    scf.if %18 {
      %cst_22 = arith.constant 0.000000e+00 : f32
      %37 = vector.broadcast %cst_22 : f32 to vector<128x1xf32>
      %c0_23 = arith.constant 0 : index
      %c0_24 = arith.constant 0 : index
      %38 = vector.load %arg10[%c0_23, %c0_24] : memref<128x1xf32, #tpu.memory_space<vmem>>, vector<128x1xf32>
      tpu.vector_store %arg10[%c0_23, %c0_24], %37 {strides = array<i32>} : memref<128x1xf32, #tpu.memory_space<vmem>>, vector<128x1xf32>,
    } else {
    }
    %c256_i32 = arith.constant 256 : i32
    %19 = arith.muli %arg1, %c256_i32 : i32
    %20 = tpu.iota {dimensions = array<i32: 1>} : vector<1x256xi32>
    %21 = vector.broadcast %19 : i32 to vector<1x256xi32>
    %22 = arith.addi %21, %20 : vector<1x256xi32>
    %c256_i32_13 = arith.constant 256 : i32
    %23 = vector.broadcast %c256_i32_13 : i32 to vector<1x256xi32>
    %24 = arith.cmpi slt, %22, %23 : vector<1x256xi32>
    %c0_14 = arith.constant 0 : index
    %c0_15 = arith.constant 0 : index
    %25 = vector.load %arg10[%c0_14, %c0_15] : memref<128x1xf32, #tpu.memory_space<vmem>>, vector<128x1xf32>
    %cst_16 = arith.constant 0.000000e+00 : f32
    %26 = vector.shape_cast %24 : vector<1x256xi1> to vector<1x256xi1>
    %27 = vector.broadcast %26 : vector<1x256xi1> to vector<128x256xi1>
    %28 = vector.broadcast %cst_16 : f32 to vector<128x256xf32>
    %29 = arith.select %27, %7, %28 : vector<128x256xi1>, vector<128x256xf32>
    %cst_17 = arith.constant dense<0.000000e+00> : vector<128xf32>
    %30 = vector.multi_reduction <add>, %29, %cst_17 [1] : vector<128x256xf32> to vector<128xf32>
    %31 = vector.shape_cast %30 : vector<128xf32> to vector<128x1xf32>
    %32 = arith.addf %25, %31 : vector<128x1xf32>
    %c0_18 = arith.constant 0 : index
    %c0_19 = arith.constant 0 : index
    %33 = vector.load %arg10[%c0_18, %c0_19] : memref<128x1xf32, #tpu.memory_space<vmem>>, vector<128x1xf32>
    tpu.vector_store %arg10[%c0_18, %c0_19], %32 {strides = array<i32>} : memref<128x1xf32, #tpu.memory_space<vmem>>, vector<128x1xf32>,
    %c0_i32_20 = arith.constant 0 : i32
    %34 = arith.cmpi eq, %arg1, %c0_i32_20 : i32
    %35 = arith.extui %34 : i1 to i32
    %c0_i32_21 = arith.constant 0 : i32
    %36 = arith.cmpi ne, %35, %c0_i32_21 : i32
    scf.if %36 {
      %c0_22 = arith.constant 0 : index
      %c0_23 = arith.constant 0 : index
      %37 = vector.load %arg10[%c0_22, %c0_23] : memref<128x1xf32, #tpu.memory_space<vmem>>, vector<128x1xf32>
      %cst_24 = arith.constant 3.906250e-03 : f32
      %38 = vector.broadcast %cst_24 : f32 to vector<128x1xf32>
      %39 = arith.mulf %37, %38 : vector<128x1xf32>
      %c0_25 = arith.constant 0 : index
      %c0_26 = arith.constant 0 : index
      %40 = vector.load %arg5[%c0_25, %c0_26] : memref<128x1xf32, #tpu.memory_space<vmem>>, vector<128x1xf32>
      %41 = arith.mulf %39, %40 : vector<128x1xf32>
      %cst_27 = arith.constant dense<0.000000e+00> : vector<1xf32>
      %42 = vector.multi_reduction <add>, %41, %cst_27 [0] : vector<128x1xf32> to vector<1xf32>
      %43 = vector.shape_cast %42 : vector<1xf32> to vector<1x1xf32>
      %c0_28 = arith.constant 0 : index
      %c0_29 = arith.constant 0 : index
      %44 = vector.load %arg6[%c0_28, %c0_29] : memref<1x1xf32, #tpu.memory_space<vmem>>, vector<1x1xf32>
      %45 = arith.addf %43, %44 : vector<1x1xf32>
      %cst_30 = arith.constant 0.000000e+00 : f32
      %46 = vector.broadcast %cst_30 : f32 to vector<1x1xf32>
      %47 = arith.subf %46, %45 : vector<1x1xf32>
      %48 = math.exp %47 : vector<1x1xf32>
      %cst_31 = arith.constant 1.000000e+00 : f32
      %49 = vector.broadcast %cst_31 : f32 to vector<1x1xf32>
      %50 = arith.addf %49, %48 : vector<1x1xf32>
      %cst_32 = arith.constant 1.000000e+00 : f32
      %51 = vector.broadcast %cst_32 : f32 to vector<1x1xf32>
      %52 = arith.divf %51, %50 : vector<1x1xf32>
      %c0_33 = arith.constant 0 : index
      %c0_34 = arith.constant 0 : index
      %c0_35 = arith.constant 0 : index
      %53 = vector.load %arg9[%c0_33, %c0_34, %c0_35] : memref<1x1x1xf32, #tpu.memory_space<vmem>>, vector<1x1x1xf32>
      %54 = vector.shape_cast %53 : vector<1x1x1xf32> to vector<1x1xf32>
      %55 = vector.shape_cast %52 : vector<1x1xf32> to vector<1x1x1xf32>
      tpu.vector_store %arg9[%c0_33, %c0_34, %c0_35], %55 {strides = array<i32>} : memref<1x1x1xf32, #tpu.memory_space<vmem>>, vector<1x1x1xf32>,
    } else {
    }
    return
  }
  func.func @transform_0(%arg0: i32, %arg1: i32) -> (i32, i32, i32) {
    %c0_i32 = arith.constant 0 : i32
    %c0_i32_0 = arith.constant 0 : i32
    return %arg0, %c0_i32, %arg1 : i32, i32, i32
  }
  func.func @transform_1(%arg0: i32, %arg1: i32) -> (i32, i32) {
    %c0_i32 = arith.constant 0 : i32
    %c0_i32_0 = arith.constant 0 : i32
    %c0_i32_1 = arith.constant 0 : i32
    return %c0_i32, %c0_i32_0 : i32, i32
  }
  func.func @transform_2(%arg0: i32, %arg1: i32) -> (i32, i32) {
    %c0_i32 = arith.constant 0 : i32
    %c0_i32_0 = arith.constant 0 : i32
    %c0_i32_1 = arith.constant 0 : i32
    return %c0_i32, %c0_i32_0 : i32, i32
  }
  func.func @transform_3(%arg0: i32, %arg1: i32) -> (i32, i32) {
    %c0_i32 = arith.constant 0 : i32
    %c0_i32_0 = arith.constant 0 : i32
    %c0_i32_1 = arith.constant 0 : i32
    return %c0_i32, %c0_i32_0 : i32, i32
  }
  func.func @transform_4(%arg0: i32, %arg1: i32) -> (i32, i32) {
    %c0_i32 = arith.constant 0 : i32
    %c0_i32_0 = arith.constant 0 : i32
    %c0_i32_1 = arith.constant 0 : i32
    return %c0_i32, %c0_i32_0 : i32, i32
  }
  func.func @transform_5(%arg0: i32, %arg1: i32) -> (i32, i32, i32) {
    %c0_i32 = arith.constant 0 : i32
    %c0_i32_0 = arith.constant 0 : i32
    return %arg0, %c0_i32, %arg1 : i32, i32, i32
  }
  func.func @transform_6(%arg0: i32, %arg1: i32) -> (i32, i32, i32) {
    %c0_i32 = arith.constant 0 : i32
    %c0_i32_0 = arith.constant 0 : i32
    return %arg0, %c0_i32, %arg1 : i32, i32, i32
  }
  func.func @transform_7(%arg0: i32, %arg1: i32) -> (i32, i32, i32) {
    %c0_i32 = arith.constant 0 : i32
    %c0_i32_0 = arith.constant 0 : i32
    %c0_i32_1 = arith.constant 0 : i32
    return %arg0, %c0_i32, %c0_i32_0 : i32, i32, i32
  }
}

</mosaic_0001>

<llo_original>
// kernel: _lambda_.1
$region0: #{_lambda_.1}
  #allocation0 [shape = 'u32[]', space=smem, size = 0x4, offset = 0x4, fixed_abs, tag = 'smem constant byte address 0x4 - core index']
  #allocation1 [shape = 'u32[144,128]{1,0:T(1,128)}', space=vmem, size = 0x12000, scoped, tag = 'internal scratch']
  #allocation2 [shape = 'f32[128,1]{1,0:T(8,128)}', space=vmem, size = 0x10000, scoped, tag = 'scratch operand']
  #allocation3 [shape = 'f32[1,1]{1,0:T(1,128)S(1)}', space=vmem, size = 0x200, scoped, tag = 'scoped memory for _lambda_.1']
  %s0 = inlined_call_operand.vmem [shape: f32[2,54,256], index: 0, kind: input, shape index: {}]
  %s1 = inlined_call_operand.vmem [shape: bf16[128,54], index: 1, kind: input, shape index: {}]
  %s2 = inlined_call_operand.vmem [shape: f32[128,1], index: 2, kind: input, shape index: {}]
  %s3 = inlined_call_operand.vmem [shape: f32[128,1], index: 3, kind: input, shape index: {}]
  %s4 = inlined_call_operand.<no memory space> [shape: f32[1,1], index: 4, kind: input, shape index: {}]
  %s5 = inlined_call_operand.vmem [shape: f32[2,36,256], index: 5, kind: output, shape index: {0}]
  %s6 = inlined_call_operand.vmem [shape: f32[2,2,256], index: 6, kind: output, shape index: {1}]
  %s7 = inlined_call_operand.vmem [shape: f32[2,1,1], index: 7, kind: output, shape index: {2}]
  %8 = xla_tuple %s5, %s6, %s7
  %s9 = sld [smem:[#allocation0]]
  $region77: #{_lambda_.1} parent=0
    _
  %s11 = ssub.s32 1, %s9
  %s12 = scalar_select 0, %s11, %s9
  %v13 = vstv %s4
  %14 = vst [vmem:[#allocation3] sm:$0x1] %v13
  loop: start=0, step=1, limit=4
  $region2: #{_lambda_.1} parent=0 // loop_pre_header
    _
  $region3: #{_lambda_.1} parent=0 // loop_header
    %s16 = sphi 0, %s20
    %p17 = scmp.ge.s32.totalorder %s16, 4
    %s23 = sphi 0, %s35
    %s24 = sphi 0, %s31
    %s25 = sphi 0, %s23
    %s26 = sphi 0, %s24
    %s27 = sphi 0, %s25
    %s28 = sphi 0, %s26
    %s40 = sphi 0, %s42
    %s43 = sphi 0, %s40
    %s44 = sphi 0, %s43
    %s60 = sphi 0, %s44
    %s64 = sphi 0, %s64
    %s66 = sphi 0, %s64
    %s67 = sphi 0, %s66
    %s81 = sphi 0, %s67
    %s85 = sphi 0, %s85
    %s87 = sphi 0, %s85
    %s88 = sphi 0, %s87
    %s102 = sphi 0, %s88
    %s106 = sphi 0, %s106
    %s108 = sphi 0, %s106
    %s109 = sphi 0, %s108
    %s123 = sphi 0, %s109
    %s127 = sphi 0, %s127
    %s129 = sphi 0, %s127
    %s130 = sphi 0, %s129
    %s144 = sphi 0, %s130
    %s152 = sphi 0, %s154
    %s155 = sphi 0, %s152
    %s156 = sphi 0, %s155
    %s172 = sphi 0, %s156
    %s180 = sphi 0, %s182
    %s183 = sphi 0, %s180
    %s184 = sphi 0, %s183
    %s200 = sphi 0, %s184
    %s206 = sphi 0, %s208
    %s209 = sphi 0, %s206
    %s210 = sphi 0, %s209
    %s226 = sphi 0, %s210
  $region4: #{_lambda_.1} parent=0 // loop_header_branch
    %19 = sbr.rel (%p17) target = $region8
  $region5: #{_lambda_.1} parent=0 // loop_body
    %s21 = ssub.s32 %s16, 1
    %s22 = ssub.s32 %s16, 2
    %s29 = sadd.s32 1, %s24
    %p30 = scmp.ge.s32.totalorder %s29, 1
    %s31 = scalar_select %p30, 0, %s29
    %s32 = sadd.s32 1, %s23
    %s33 = scalar_select %p30, %s32, %s23
    %p34 = scmp.ge.s32.totalorder %s33, 2
    %s35 = scalar_select %p34, 0, %s33
    %s36 = ssub.s32 %s23, %s35
    %s37 = ssub.s32 %s24, %s31
    %s38 = sor.u32 %s36, %s37
    %p39 = scmp.eq.s32.totalorder %s38, 0
    %s41 = sadd.s32 %s40, 1
    %s42 = scalar_select %p39, %s40, %s41
    %p45 = pneg %p39
    %p46 = scmp.eq.s32.totalorder %s16, 1
    %p47 = por %p45, %p46
    %p48 = scmp.ne.s32.totalorder %s40, %s43
    %p49 = scmp.eq.s32.totalorder %s16, 0
    %p50 = por %p48, %p49
    %p51 = scmp.ne.s32.totalorder %s40, %s43
    %p52 = scmp.eq.s32.totalorder %s21, 1
    %p53 = por %p51, %p52
    %p54 = scmp.ne.s32.totalorder %s43, %s44
    %p55 = scmp.eq.s32.totalorder %s21, 0
    %p56 = por %p54, %p55
    %p57 = scmp.ne.s32.totalorder %s43, %s44
    %p58 = scmp.eq.s32.totalorder %s22, 1
    %p59 = por %p57, %p58
    %p61 = scmp.ne.s32.totalorder %s44, %s60
    %p62 = scmp.eq.s32.totalorder %s22, 0
    %p63 = por %p61, %p62
    %s65 = sadd.s32 %s64, 1
    %p68 = scmp.eq.s32.totalorder %s16, 1
    %p69 = scmp.ne.s32.totalorder %s64, %s66
    %p70 = scmp.eq.s32.totalorder %s16, 0
    %p71 = por %p69, %p70
    %p72 = scmp.ne.s32.totalorder %s64, %s66
    %p73 = scmp.eq.s32.totalorder %s21, 1
    %p74 = por %p72, %p73
    %p75 = scmp.ne.s32.totalorder %s66, %s67
    %p76 = scmp.eq.s32.totalorder %s21, 0
    %p77 = por %p75, %p76
    %p78 = scmp.ne.s32.totalorder %s66, %s67
    %p79 = scmp.eq.s32.totalorder %s22, 1
    %p80 = por %p78, %p79
    %p82 = scmp.ne.s32.totalorder %s67, %s81
    %p83 = scmp.eq.s32.totalorder %s22, 0
    %p84 = por %p82, %p83
    %s86 = sadd.s32 %s85, 1
    %p89 = scmp.eq.s32.totalorder %s16, 1
    %p90 = scmp.ne.s32.totalorder %s85, %s87
    %p91 = scmp.eq.s32.totalorder %s16, 0
    %p92 = por %p90, %p91
    %p93 = scmp.ne.s32.totalorder %s85, %s87
    %p94 = scmp.eq.s32.totalorder %s21, 1
    %p95 = por %p93, %p94
    %p96 = scmp.ne.s32.totalorder %s87, %s88
    %p97 = scmp.eq.s32.totalorder %s21, 0
    %p98 = por %p96, %p97
    %p99 = scmp.ne.s32.totalorder %s87, %s88
    %p100 = scmp.eq.s32.totalorder %s22, 1
    %p101 = por %p99, %p100
    %p103 = scmp.ne.s32.totalorder %s88, %s102
    %p104 = scmp.eq.s32.totalorder %s22, 0
    %p105 = por %p103, %p104
    %s107 = sadd.s32 %s106, 1
    %p110 = scmp.eq.s32.totalorder %s16, 1
    %p111 = scmp.ne.s32.totalorder %s106, %s108
    %p112 = scmp.eq.s32.totalorder %s16, 0
    %p113 = por %p111, %p112
    %p114 = scmp.ne.s32.totalorder %s106, %s108
    %p115 = scmp.eq.s32.totalorder %s21, 1
    %p116 = por %p114, %p115
    %p117 = scmp.ne.s32.totalorder %s108, %s109
    %p118 = scmp.eq.s32.totalorder %s21, 0
    %p119 = por %p117, %p118
    %p120 = scmp.ne.s32.totalorder %s108, %s109
    %p121 = scmp.eq.s32.totalorder %s22, 1
    %p122 = por %p120, %p121
    %p124 = scmp.ne.s32.totalorder %s109, %s123
    %p125 = scmp.eq.s32.totalorder %s22, 0
    %p126 = por %p124, %p125
    %s128 = sadd.s32 %s127, 1
    %p131 = scmp.eq.s32.totalorder %s16, 1
    %p132 = scmp.ne.s32.totalorder %s127, %s129
    %p133 = scmp.eq.s32.totalorder %s16, 0
    %p134 = por %p132, %p133
    %p135 = scmp.ne.s32.totalorder %s127, %s129
    %p136 = scmp.eq.s32.totalorder %s21, 1
    %p137 = por %p135, %p136
    %p138 = scmp.ne.s32.totalorder %s129, %s130
    %p139 = scmp.eq.s32.totalorder %s21, 0
    %p140 = por %p138, %p139
    %p141 = scmp.ne.s32.totalorder %s129, %s130
    %p142 = scmp.eq.s32.totalorder %s22, 1
    %p143 = por %p141, %p142
    %p145 = scmp.ne.s32.totalorder %s130, %s144
    %p146 = scmp.eq.s32.totalorder %s22, 0
    %p147 = por %p145, %p146
    %s148 = ssub.s32 %s23, %s35
    %s149 = ssub.s32 %s24, %s31
    %s150 = sor.u32 %s148, %s149
    %p151 = scmp.eq.s32.totalorder %s150, 0
    %s153 = sadd.s32 %s152, 1
    %s154 = scalar_select %p151, %s152, %s153
    %p157 = pneg %p151
    %p158 = scmp.eq.s32.totalorder %s16, 1
    %p159 = por %p157, %p158
    %p160 = scmp.ne.s32.totalorder %s152, %s155
    %p161 = scmp.eq.s32.totalorder %s16, 0
    %p162 = por %p160, %p161
    %p163 = scmp.ne.s32.totalorder %s152, %s155
    %p164 = scmp.eq.s32.totalorder %s21, 1
    %p165 = por %p163, %p164
    %p166 = scmp.ne.s32.totalorder %s155, %s156
    %p167 = scmp.eq.s32.totalorder %s21, 0
    %p168 = por %p166, %p167
    %p169 = scmp.ne.s32.totalorder %s155, %s156
    %p170 = scmp.eq.s32.totalorder %s22, 1
    %p171 = por %p169, %p170
    %p173 = scmp.ne.s32.totalorder %s156, %s172
    %p174 = scmp.eq.s32.totalorder %s22, 0
    %p175 = por %p173, %p174
    %s176 = ssub.s32 %s23, %s35
    %s177 = ssub.s32 %s24, %s31
    %s178 = sor.u32 %s176, %s177
    %p179 = scmp.eq.s32.totalorder %s178, 0
    %s181 = sadd.s32 %s180, 1
    %s182 = scalar_select %p179, %s180, %s181
    %p185 = pneg %p179
    %p186 = scmp.eq.s32.totalorder %s16, 1
    %p187 = por %p185, %p186
    %p188 = scmp.ne.s32.totalorder %s180, %s183
    %p189 = scmp.eq.s32.totalorder %s16, 0
    %p190 = por %p188, %p189
    %p191 = scmp.ne.s32.totalorder %s180, %s183
    %p192 = scmp.eq.s32.totalorder %s21, 1
    %p193 = por %p191, %p192
    %p194 = scmp.ne.s32.totalorder %s183, %s184
    %p195 = scmp.eq.s32.totalorder %s21, 0
    %p196 = por %p194, %p195
    %p197 = scmp.ne.s32.totalorder %s183, %s184
    %p198 = scmp.eq.s32.totalorder %s22, 1
    %p199 = por %p197, %p198
    %p201 = scmp.ne.s32.totalorder %s184, %s200
    %p202 = scmp.eq.s32.totalorder %s22, 0
    %p203 = por %p201, %p202
    %s204 = ssub.s32 %s23, %s35
    %p205 = scmp.eq.s32.totalorder %s204, 0
    %s207 = sadd.s32 %s206, 1
    %s208 = scalar_select %p205, %s206, %s207
    %p211 = pneg %p205
    %p212 = scmp.eq.s32.totalorder %s16, 1
    %p213 = por %p211, %p212
    %p214 = scmp.ne.s32.totalorder %s206, %s209
    %p215 = scmp.eq.s32.totalorder %s16, 0
    %p216 = por %p214, %p215
    %p217 = scmp.ne.s32.totalorder %s206, %s209
    %p218 = scmp.eq.s32.totalorder %s21, 1
    %p219 = por %p217, %p218
    %p220 = scmp.ne.s32.totalorder %s209, %s210
    %p221 = scmp.eq.s32.totalorder %s21, 0
    %p222 = por %p220, %p221
    %p223 = scmp.ne.s32.totalorder %s209, %s210
    %p224 = scmp.eq.s32.totalorder %s22, 1
    %p225 = por %p223, %p224
    %p227 = scmp.ne.s32.totalorder %s210, %s226
    %p228 = scmp.eq.s32.totalorder %s22, 0
    %p229 = por %p227, %p228
    %p230 = scmp.le.s32.totalorder 1, %s16
    %p231 = scmp.lt.s32.totalorder %s16, 3
    %p232 = pnand %p230, %p231
    %p233 = pneg %p232
    // Predicated region
    $region9: #{_lambda_.1} parent=5 // pred_check
      _
    $region10: #{_lambda_.1} parent=5 // pred_check_branch
      %235 = sbr.rel (%p232) target = $region12
    $region11: #{_lambda_.1} parent=5 // pred_region
      %s236 = ssub.s32 %s16, 1
      // Predicated region
      $region13: #{_lambda_.1} parent=11 // pred_check
        %p237 = pneg %p77
      $region14: #{_lambda_.1} parent=11 // pred_check_branch
        %239 = sbr.rel (%p237) target = $region16
      $region15: #{_lambda_.1} parent=11 // pred_region
        _
      $region16: #{_lambda_.1} parent=11 // pred_fallthru
        _
      // Predicated region
      $region17: #{_lambda_.1} parent=11 // pred_check
        %p240 = pneg %p98
      $region18: #{_lambda_.1} parent=11 // pred_check_branch
        %242 = sbr.rel (%p240) target = $region20
      $region19: #{_lambda_.1} parent=11 // pred_region
        _
      $region20: #{_lambda_.1} parent=11 // pred_fallthru
        _
      // Predicated region
      $region21: #{_lambda_.1} parent=11 // pred_check
        %p243 = pneg %p119
      $region22: #{_lambda_.1} parent=11 // pred_check_branch
        %245 = sbr.rel (%p243) target = $region24
      $region23: #{_lambda_.1} parent=11 // pred_region
        _
      $region24: #{_lambda_.1} parent=11 // pred_fallthru
        _
      // Predicated region
      $region25: #{_lambda_.1} parent=11 // pred_check
        %p246 = pneg %p140
      $region26: #{_lambda_.1} parent=11 // pred_check_branch
        %248 = sbr.rel (%p246) target = $region28
      $region27: #{_lambda_.1} parent=11 // pred_region
        _
      $region28: #{_lambda_.1} parent=11 // pred_fallthru
        _
    $region12: #{_lambda_.1} parent=5 // pred_fallthru
      _
    %p249 = scmp.lt.s32.totalorder %s16, 2
    // Predicated region
    $region29: #{_lambda_.1} parent=5 // pred_check
      %p250 = pneg %p249
    $region30: #{_lambda_.1} parent=5 // pred_check_branch
      %252 = sbr.rel (%p250) target = $region32
    $region31: #{_lambda_.1} parent=5 // pred_region
      // Predicated region
      $region33: #{_lambda_.1} parent=31 // pred_check
        %p253 = pneg %p50
      $region34: #{_lambda_.1} parent=31 // pred_check_branch
        %255 = sbr.rel (%p253) target = $region36
      $region35: #{_lambda_.1} parent=31 // pred_region
        %s256 = smul.u32 2, %s24
        %p257 = scmp.lt.s32.totalorder %s23, 1
        %s258 = scalar_select %p257, %s23, 1
        %p259 = scmp.lt.s32.totalorder %s256, 1
        %s260 = scalar_select %p259, %s256, 1
        %s261 = smul.addr %s258, 14
        %s262 = sadd.s32 %s260, %s261
        %s263 = smul.addr %s262, 8
        %s264 = scalar_lea.vmem %s0, %s263
        %s265 = smul.u32 2, %s24
      $region36: #{_lambda_.1} parent=31 // pred_fallthru
        _
    $region32: #{_lambda_.1} parent=5 // pred_fallthru
      _
    %p266 = scmp.le.s32.totalorder 1, %s16
    %p267 = scmp.lt.s32.totalorder %s16, 3
    %p268 = pnand %p266, %p267
    %p269 = pneg %p268
    // Predicated region
    $region37: #{_lambda_.1} parent=5 // pred_check
      _
    $region38: #{_lambda_.1} parent=5 // pred_check_branch
      %271 = sbr.rel (%p268) target = $region40
    $region39: #{_lambda_.1} parent=5 // pred_region
      %s272 = ssub.s32 %s16, 1
      %s273 = smul.u32 2, %s26
      %p274 = scmp.lt.s32.totalorder %s25, 1
      %s275 = scalar_select %p274, %s25, 1
      %p276 = scmp.lt.s32.totalorder %s273, 1
      %s277 = scalar_select %p276, %s273, 1
      %s278 = smul.addr %s275, 14
      %s279 = sadd.s32 %s277, %s278
      %s280 = smul.addr %s279, 8
      %s281 = scalar_lea.vmem %s0, %s280
      %p282 = pneg %p56
      %p283 = pneg %p53
      %p284 = pneg %p77
      %p285 = pneg %p74
      %p286 = pneg %p98
      %p287 = pneg %p95
      %p288 = pneg %p119
      %p289 = pneg %p116
      %p290 = pneg %p140
      %p291 = pneg %p137
      %p292 = pneg %p168
      %p293 = pneg %p165
      %s294 = smul.u32 2, %s26
      %p295 = scmp.lt.s32.totalorder %s25, 1
      %s296 = scalar_select %p295, %s25, 1
      %p297 = scmp.lt.s32.totalorder %s294, 1
      %s298 = scalar_select %p297, %s294, 1
      %s299 = smul.addr %s296, 10
      %s300 = sadd.s32 %s298, %s299
      %s301 = smul.addr %s300, 8
      %s302 = scalar_lea.vmem %s5, %s301
      %p303 = pneg %p196
      %p304 = pneg %p193
      %s305 = smul.u32 2, %s26
      %p306 = scmp.lt.s32.totalorder %s25, 1
      %s307 = scalar_select %p306, %s25, 1
      %p308 = scmp.lt.s32.totalorder %s305, 1
      %s309 = scalar_select %p308, %s305, 1
      %s310 = smul.addr %s307, 2
      %s311 = sadd.s32 %s309, %s310
      %s312 = smul.addr %s311, 2
      %s313 = scalar_lea.vmem %s6, %s312
      %p314 = pneg %p222
      %p315 = pneg %p219
      %p316 = scmp.lt.s32.totalorder %s25, 1
      %s317 = scalar_select %p316, %s25, 1
      %s318 = scalar_lea.vmem %s7, %s317
      %s319 = smul.u32 2, %s26
      %p320 = scmp.lt.s32.totalorder %s25, 1
      %s321 = scalar_select %p320, %s25, 1
      %p322 = scmp.lt.s32.totalorder %s319, 1
      %s323 = scalar_select %p322, %s319, 1
      %s324 = smul.addr %s321, 14
      %s325 = sadd.s32 %s323, %s324
      %s326 = smul.addr %s325, 8
      %s327 = scalar_lea.vmem %s0, %s326
      %s328 = smul.u32 2, %s26
      %s329 = smul.u32 2, %s26
      %p330 = scmp.lt.s32.totalorder %s25, 1
      %s331 = scalar_select %p330, %s25, 1
      %p332 = scmp.lt.s32.totalorder %s329, 1
      %s333 = scalar_select %p332, %s329, 1
      %s334 = smul.addr %s331, 10
      %s335 = sadd.s32 %s333, %s334
      %s336 = smul.addr %s335, 8
      %s337 = scalar_lea.vmem %s5, %s336
      %s338 = smul.u32 2, %s26
      %s339 = smul.u32 2, %s26
      %p340 = scmp.lt.s32.totalorder %s25, 1
      %s341 = scalar_select %p340, %s25, 1
      %p342 = scmp.lt.s32.totalorder %s339, 1
      %s343 = scalar_select %p342, %s339, 1
      %s344 = smul.addr %s341, 2
      %s345 = sadd.s32 %s343, %s344
      %s346 = smul.addr %s345, 2
      %s347 = scalar_lea.vmem %s6, %s346
      %s348 = smul.u32 2, %s26
      %p349 = scmp.lt.s32.totalorder %s25, 1
      %s350 = scalar_select %p349, %s25, 1
      %s351 = scalar_lea.vmem %s7, %s350
      %v353 = vld [vmem:[%s327] sm:$0xff]
      %v354 = vld [vmem:[%s327 + $0x8] sm:$0xff]
      %v355 = vld [vmem:[%s327 + $0x10] sm:$0xff]
      %v356 = vld [vmem:[%s327 + $0x18] sm:$0xff]
      %v357 = vld [vmem:[%s327 + $0x20] sm:$0xff]
      %v358 = vld [vmem:[%s327 + $0x28] sm:$0xff]
      %v359 = vld [vmem:[%s327 + $0x30] sm:$0xff]
      %v360 = vld [vmem:[%s327 + $0x38] sm:$0xff]
      %v361 = vld [vmem:[%s327 + $0x40] sm:$0xff]
      %v362 = vld [vmem:[%s327 + $0x48] sm:$0xff]
      %v363 = vld [vmem:[%s327 + $0x50] sm:$0xff]
      %v364 = vld [vmem:[%s327 + $0x58] sm:$0xff]
      %v365 = vld [vmem:[%s327 + $0x60] sm:$0x3f]
      %v366 = vld [vmem:[%s327 + $0x68] sm:$0x3f]
      %v367 = vpack.c.bf16 %v355, %v353
      %v368 = vpack.c.bf16 %v356, %v354
      %v369 = vpack.c.bf16 %v359, %v357
      %v370 = vpack.c.bf16 %v360, %v358
      %v371 = vpack.c.bf16 %v363, %v361
      %v372 = vpack.c.bf16 %v364, %v362
      %v373 = vpack.c.bf16 %v365, %v365
      %v374 = vpack.c.bf16 %v366, %v366
      %v375 = vld [vmem:[%s1] sm:$0xf]
      %v376 = vld [vmem:[%s1 + $0x4] sm:$0xf]
      %v377 = vld [vmem:[%s1 + $0x8] sm:$0xf]
      %v378 = vld [vmem:[%s1 + $0xc] sm:$0xf]
      %v379 = vld [vmem:[%s1 + $0x10] sm:$0xf]
      %v380 = vld [vmem:[%s1 + $0x14] sm:$0xf]
      %v381 = vld [vmem:[%s1 + $0x18] sm:$0xf]
      %v382 = vld [vmem:[%s1 + $0x1c] sm:$0xf]
      %v383 = vld [vmem:[%s1 + $0x20] sm:$0xf]
      %v384 = vld [vmem:[%s1 + $0x24] sm:$0xf]
      %v385 = vld [vmem:[%s1 + $0x28] sm:$0xf]
      %v386 = vld [vmem:[%s1 + $0x2c] sm:$0xf]
      %v387 = vld [vmem:[%s1 + $0x30] sm:$0xf]
      %v388 = vld [vmem:[%s1 + $0x34] sm:$0xf]
      %v389 = vld [vmem:[%s1 + $0x38] sm:$0xf]
      %v390 = vld [vmem:[%s1 + $0x3c] sm:$0xf]
      %v391 = vld [vmem:[%s2] sm:$0xff]
      %v392 = vld [vmem:[%s2 + $0x8] sm:$0xff]
      %v393 = vld [vmem:[%s2 + $0x10] sm:$0xff]
      %v394 = vld [vmem:[%s2 + $0x18] sm:$0xff]
      %v395 = vld [vmem:[%s2 + $0x20] sm:$0xff]
      %v396 = vld [vmem:[%s2 + $0x28] sm:$0xff]
      %v397 = vld [vmem:[%s2 + $0x30] sm:$0xff]
      %v398 = vld [vmem:[%s2 + $0x38] sm:$0xff]
      %v399 = vld [vmem:[%s2 + $0x40] sm:$0xff]
      %v400 = vld [vmem:[%s2 + $0x48] sm:$0xff]
      %v401 = vld [vmem:[%s2 + $0x50] sm:$0xff]
      %v402 = vld [vmem:[%s2 + $0x58] sm:$0xff]
      %v403 = vld [vmem:[%s2 + $0x60] sm:$0xff]
      %v404 = vld [vmem:[%s2 + $0x68] sm:$0xff]
      %v405 = vld [vmem:[%s2 + $0x70] sm:$0xff]
      %v406 = vld [vmem:[%s2 + $0x78] sm:$0xff]
      %408 = vset.pattern.permute.xlu0 0
      %409 = vperm.xlu0 %408, %v391
      %v410 = vpop.permute.xlu0 %409
      %413 = vset.pattern.permute.xlu0 0
      %414 = vperm.xlu0 %413, %v392
      %v415 = vpop.permute.xlu0 %414
      %418 = vset.pattern.permute.xlu0 0
      %419 = vperm.xlu0 %418, %v393
      %v420 = vpop.permute.xlu0 %419
      %423 = vset.pattern.permute.xlu0 0
      %424 = vperm.xlu0 %423, %v394
      %v425 = vpop.permute.xlu0 %424
      %428 = vset.pattern.permute.xlu0 0
      %429 = vperm.xlu0 %428, %v395
      %v430 = vpop.permute.xlu0 %429
      %433 = vset.pattern.permute.xlu0 0
      %434 = vperm.xlu0 %433, %v396
      %v435 = vpop.permute.xlu0 %434
      %438 = vset.pattern.permute.xlu0 0
      %439 = vperm.xlu0 %438, %v397
      %v440 = vpop.permute.xlu0 %439
      %443 = vset.pattern.permute.xlu0 0
      %444 = vperm.xlu0 %443, %v398
      %v445 = vpop.permute.xlu0 %444
      %448 = vset.pattern.permute.xlu0 0
      %449 = vperm.xlu0 %448, %v399
      %v450 = vpop.permute.xlu0 %449
      %453 = vset.pattern.permute.xlu0 0
      %454 = vperm.xlu0 %453, %v400
      %v455 = vpop.permute.xlu0 %454
      %458 = vset.pattern.permute.xlu0 0
      %459 = vperm.xlu0 %458, %v401
      %v460 = vpop.permute.xlu0 %459
      %463 = vset.pattern.permute.xlu0 0
      %464 = vperm.xlu0 %463, %v402
      %v465 = vpop.permute.xlu0 %464
      %468 = vset.pattern.permute.xlu0 0
      %469 = vperm.xlu0 %468, %v403
      %v470 = vpop.permute.xlu0 %469
      %473 = vset.pattern.permute.xlu0 0
      %474 = vperm.xlu0 %473, %v404
      %v475 = vpop.permute.xlu0 %474
      %478 = vset.pattern.permute.xlu0 0
      %479 = vperm.xlu0 %478, %v405
      %v480 = vpop.permute.xlu0 %479
      %483 = vset.pattern.permute.xlu0 0
      %484 = vperm.xlu0 %483, %v406
      %v485 = vpop.permute.xlu0 %484
      %v503 = vunpack.c.l.b16 %v375
      %v504 = vunpack.c.l.b16 %v376
      %v505 = vunpack.c.l.b16 %v377
      %v506 = vunpack.c.l.b16 %v378
      %v507 = vunpack.c.l.b16 %v379
      %v508 = vunpack.c.l.b16 %v380
      %v509 = vunpack.c.l.b16 %v381
      %v510 = vunpack.c.l.b16 %v382
      %v511 = vunpack.c.l.b16 %v383
      %v512 = vunpack.c.l.b16 %v384
      %v513 = vunpack.c.l.b16 %v385
      %v514 = vunpack.c.l.b16 %v386
      %v515 = vunpack.c.l.b16 %v387
      %v516 = vunpack.c.l.b16 %v388
      %v517 = vunpack.c.l.b16 %v389
      %v518 = vunpack.c.l.b16 %v390
      %v519 = vpack.c.b16 %v504, %v503
      %v520 = vpack.c.b16 %v506, %v505
      %v521 = vpack.c.b16 %v508, %v507
      %v522 = vpack.c.b16 %v510, %v509
      %v523 = vpack.c.b16 %v512, %v511
      %v524 = vpack.c.b16 %v514, %v513
      %v525 = vpack.c.b16 %v516, %v515
      %v526 = vpack.c.b16 %v518, %v517
      %vm527 = vcmask 441344
      %v529 = vsel %vm527, %v519, 0
      %v532 = vsel %vm527, %v520, 0
      %v535 = vsel %vm527, %v521, 0
      %v538 = vsel %vm527, %v522, 0
      %v541 = vsel %vm527, %v523, 0
      %v544 = vsel %vm527, %v524, 0
      %v547 = vsel %vm527, %v525, 0
      %v550 = vsel %vm527, %v526, 0
      %vm552 = vcmask 1042432
      %v554 = vsel %vm552, %v373, 0
      %v557 = vsel %vm552, %v374, 0
      %559 = vmatprep.subr.bf16.mxu0 %v368
      %560 = vmatpush1.bf16.msra.mxu0 %v367
      %561 = vmatprep.subr.bf16.mxu0 %v370
      %562 = vmatpush1.bf16.msra.mxu0 %v369
      %563 = vmatprep.subr.bf16.mxu0 %v372
      %564 = vmatpush1.bf16.msra.mxu0 %v371
      %565 = vmatprep.subr.bf16.mxu0 %v557
      %566 = vmatpush1.bf16.msra.mxu0 %v554
      %567 = vmatprep.subr.bf16.mxu0 0
      %568 = vmatpush1.bf16.msra.mxu0 0
      %569 = vmatprep.subr.bf16.mxu0 0
      %570 = vmatpush1.bf16.msra.mxu0 0
      %571 = vmatprep.subr.bf16.mxu0 0
      %572 = vmatpush1.bf16.msra.mxu0 0
      %573 = vmatprep.subr.bf16.mxu0 0
      %574 = vmatpush1.bf16.msra.mxu0 0
      %575 = vmatprep.subr.bf16.mxu0 0
      %576 = vmatpush1.bf16.msra.mxu0 0
      %577 = vmatprep.subr.bf16.mxu0 0
      %578 = vmatpush1.bf16.msra.mxu0 0
      %579 = vmatprep.subr.bf16.mxu0 0
      %580 = vmatpush1.bf16.msra.mxu0 0
      %581 = vmatprep.subr.bf16.mxu0 0
      %582 = vmatpush1.bf16.msra.mxu0 0
      %583 = vmatprep.subr.bf16.mxu0 0
      %584 = vmatpush1.bf16.msra.mxu0 0
      %585 = vmatprep.subr.bf16.mxu0 0
      %586 = vmatpush1.bf16.msra.mxu0 0
      %587 = vmatprep.subr.bf16.mxu0 0
      %588 = vmatpush1.bf16.msra.mxu0 0
      %589 = vmatprep.subr.bf16.mxu0 0
      %590 = vmatpush1.bf16.msra.mxu0 0
      %591 = vmatprep.mubr.bf16.mxu0 0
      %592 = vmatmul.mubr.bf16.gmra.mrb[0].mxu0 %v529
      %v593 = vpop.f32.mrb[0].mxu0
      %v594 = vadd.f32 %v410, %v593
      %v595 = vpop.f32.mrb[0].mxu0
      %v596 = vadd.f32 %v410, %v595
      %v597 = vpop.f32.mrb[0].mxu0
      %v598 = vadd.f32 %v415, %v597
      %v599 = vpop.f32.mrb[0].mxu0
      %v600 = vadd.f32 %v415, %v599
      %601 = vmatprep.mubr.bf16.mxu0 0
      %602 = vmatmul.mubr.bf16.gmra.mrb[0].mxu0 %v532
      %v603 = vpop.f32.mrb[0].mxu0
      %v604 = vadd.f32 %v420, %v603
      %v605 = vpop.f32.mrb[0].mxu0
      %v606 = vadd.f32 %v420, %v605
      %v607 = vpop.f32.mrb[0].mxu0
      %v608 = vadd.f32 %v425, %v607
      %v609 = vpop.f32.mrb[0].mxu0
      %v610 = vadd.f32 %v425, %v609
      %611 = vmatprep.mubr.bf16.mxu0 0
      %612 = vmatmul.mubr.bf16.gmra.mrb[0].mxu0 %v535
      %v613 = vpop.f32.mrb[0].mxu0
      %v614 = vadd.f32 %v430, %v613
      %v615 = vpop.f32.mrb[0].mxu0
      %v616 = vadd.f32 %v430, %v615
      %v617 = vpop.f32.mrb[0].mxu0
      %v618 = vadd.f32 %v435, %v617
      %v619 = vpop.f32.mrb[0].mxu0
      %v620 = vadd.f32 %v435, %v619
      %621 = vmatprep.mubr.bf16.mxu0 0
      %622 = vmatmul.mubr.bf16.gmra.mrb[0].mxu0 %v538
      %v623 = vpop.f32.mrb[0].mxu0
      %v624 = vadd.f32 %v440, %v623
      %v625 = vpop.f32.mrb[0].mxu0
      %v626 = vadd.f32 %v440, %v625
      %v627 = vpop.f32.mrb[0].mxu0
      %v628 = vadd.f32 %v445, %v627
      %v629 = vpop.f32.mrb[0].mxu0
      %v630 = vadd.f32 %v445, %v629
      %631 = vmatprep.mubr.bf16.mxu0 0
      %632 = vmatmul.mubr.bf16.gmra.mrb[0].mxu0 %v541
      %v633 = vpop.f32.mrb[0].mxu0
      %v634 = vadd.f32 %v450, %v633
      %v635 = vpop.f32.mrb[0].mxu0
      %v636 = vadd.f32 %v450, %v635
      %v637 = vpop.f32.mrb[0].mxu0
      %v638 = vadd.f32 %v455, %v637
      %v639 = vpop.f32.mrb[0].mxu0
      %v640 = vadd.f32 %v455, %v639
      %641 = vmatprep.mubr.bf16.mxu0 0
      %642 = vmatmul.mubr.bf16.gmra.mrb[0].mxu0 %v544
      %v643 = vpop.f32.mrb[0].mxu0
      %v644 = vadd.f32 %v460, %v643
      %v645 = vpop.f32.mrb[0].mxu0
      %v646 = vadd.f32 %v460, %v645
      %v647 = vpop.f32.mrb[0].mxu0
      %v648 = vadd.f32 %v465, %v647
      %v649 = vpop.f32.mrb[0].mxu0
      %v650 = vadd.f32 %v465, %v649
      %651 = vmatprep.mubr.bf16.mxu0 0
      %652 = vmatmul.mubr.bf16.gmra.mrb[0].mxu0 %v547
      %v653 = vpop.f32.mrb[0].mxu0
      %v654 = vadd.f32 %v470, %v653
      %v655 = vpop.f32.mrb[0].mxu0
      %v656 = vadd.f32 %v470, %v655
      %v657 = vpop.f32.mrb[0].mxu0
      %v658 = vadd.f32 %v475, %v657
      %v659 = vpop.f32.mrb[0].mxu0
      %v660 = vadd.f32 %v475, %v659
      %661 = vmatprep.mubr.bf16.mxu0 0
      %662 = vmatmul.mubr.bf16.gmra.mrb[0].mxu0 %v550
      %v663 = vpop.f32.mrb[0].mxu0
      %v664 = vadd.f32 %v480, %v663
      %v665 = vpop.f32.mrb[0].mxu0
      %v666 = vadd.f32 %v480, %v665
      %v667 = vpop.f32.mrb[0].mxu0
      %v668 = vadd.f32 %v485, %v667
      %v669 = vpop.f32.mrb[0].mxu0
      %v670 = vadd.f32 %v485, %v669
      %671 = vdwg.mxu0
      %672 = vst [vmem:[%s337] sm:$0xff] %v594
      %673 = vst [vmem:[%s337 + $0x8] sm:$0xff] %v596
      %674 = vst [vmem:[%s337 + $0x10] sm:$0xff] %v598
      %675 = vst [vmem:[%s337 + $0x18] sm:$0xff] %v600
      %676 = vst [vmem:[%s337 + $0x20] sm:$0xff] %v604
      %677 = vst [vmem:[%s337 + $0x28] sm:$0xff] %v606
      %678 = vst [vmem:[%s337 + $0x30] sm:$0xff] %v608
      %679 = vst [vmem:[%s337 + $0x38] sm:$0xff] %v610
      %680 = vst [vmem:[%s337 + $0x40] sm:$0xf] %v614
      %681 = vst [vmem:[%s337 + $0x48] sm:$0xf] %v616
      %v684 = vcombine.high %v614, %v616
      %v686 = vunpack.c.l.s4 1983009808
      %v687 = vunpack.c.0.s8 %v686
      %v688 = vlaneseq
      %v689 = vshrl.u32 %v688, 7
      %v690 = vsub.s32 %v687, %v689
      %v691 = vrot.slane %v684, %v690
      %693 = vst [vmem:[%s347] sm:$0xf] %v691
      %p694 = scmp.eq.s32.totalorder %s26, 0
      // Predicated region
      $region41: #{_lambda_.1} parent=39 // pred_check
        %p695 = pneg %p694
      $region42: #{_lambda_.1} parent=39 // pred_check_branch
        %697 = sbr.rel (%p695) target = $region44
      $region43: #{_lambda_.1} parent=39 // pred_region
        %vm698 = vcmask 7168
        %699 = vst.msk [vmem:[#allocation2] sm:$0xff] %vm698, 0.0
        %700 = vst.msk [vmem:[#allocation2 + $0x8] sm:$0xff] %vm698, 0.0
        %701 = vst.msk [vmem:[#allocation2 + $0x10] sm:$0xff] %vm698, 0.0
        %702 = vst.msk [vmem:[#allocation2 + $0x18] sm:$0xff] %vm698, 0.0
        %703 = vst.msk [vmem:[#allocation2 + $0x20] sm:$0xff] %vm698, 0.0
        %704 = vst.msk [vmem:[#allocation2 + $0x28] sm:$0xff] %vm698, 0.0
        %705 = vst.msk [vmem:[#allocation2 + $0x30] sm:$0xff] %vm698, 0.0
        %706 = vst.msk [vmem:[#allocation2 + $0x38] sm:$0xff] %vm698, 0.0
        %707 = vst.msk [vmem:[#allocation2 + $0x40] sm:$0xff] %vm698, 0.0
        %708 = vst.msk [vmem:[#allocation2 + $0x48] sm:$0xff] %vm698, 0.0
        %709 = vst.msk [vmem:[#allocation2 + $0x50] sm:$0xff] %vm698, 0.0
        %710 = vst.msk [vmem:[#allocation2 + $0x58] sm:$0xff] %vm698, 0.0
        %711 = vst.msk [vmem:[#allocation2 + $0x60] sm:$0xff] %vm698, 0.0
        %712 = vst.msk [vmem:[#allocation2 + $0x68] sm:$0xff] %vm698, 0.0
        %713 = vst.msk [vmem:[#allocation2 + $0x70] sm:$0xff] %vm698, 0.0
        %714 = vst.msk [vmem:[#allocation2 + $0x78] sm:$0xff] %vm698, 0.0
      $region44: #{_lambda_.1} parent=39 // pred_fallthru
        _
      %s715 = smul.u32 %s26, 256
      %v716 = vlaneseq
      %v717 = vand.u32 %v716, 127
      %v718 = vadd.s32 %v717, 128
      %v719 = vstv %s715
      %v720 = vadd.s32 %v719, %v717
      %v721 = vadd.s32 %v719, %v718
      %vm722 = vcmp.lt.s32.totalorder %v720, 256
      %vm723 = vcmp.lt.s32.totalorder %v721, 256
      %v724 = vld [vmem:[#allocation2] sm:$0xff]
      %v725 = vld [vmem:[#allocation2 + $0x8] sm:$0xff]
      %v726 = vld [vmem:[#allocation2 + $0x10] sm:$0xff]
      %v727 = vld [vmem:[#allocation2 + $0x18] sm:$0xff]
      %v728 = vld [vmem:[#allocation2 + $0x20] sm:$0xff]
      %v729 = vld [vmem:[#allocation2 + $0x28] sm:$0xff]
      %v730 = vld [vmem:[#allocation2 + $0x30] sm:$0xff]
      %v731 = vld [vmem:[#allocation2 + $0x38] sm:$0xff]
      %v732 = vld [vmem:[#allocation2 + $0x40] sm:$0xff]
      %v733 = vld [vmem:[#allocation2 + $0x48] sm:$0xff]
      %v734 = vld [vmem:[#allocation2 + $0x50] sm:$0xff]
      %v735 = vld [vmem:[#allocation2 + $0x58] sm:$0xff]
      %v736 = vld [vmem:[#allocation2 + $0x60] sm:$0xff]
      %v737 = vld [vmem:[#allocation2 + $0x68] sm:$0xff]
      %v738 = vld [vmem:[#allocation2 + $0x70] sm:$0xff]
      %v739 = vld [vmem:[#allocation2 + $0x78] sm:$0xff]
      %v740 = vsel %vm722, 1, 0
      %v741 = vsel %vm723, 1, 0
      %vm742 = vcmp.eq.s32.totalorder %v740, 1
      %vm743 = vcmp.eq.s32.totalorder %v741, 1
      %v744 = vsel %vm742, %v594, 0.0
      %v745 = vsel %vm743, %v596, 0.0
      %v746 = vsel %vm742, %v598, 0.0
      %v747 = vsel %vm743, %v600, 0.0
      %v748 = vsel %vm742, %v604, 0.0
      %v749 = vsel %vm743, %v606, 0.0
      %v750 = vsel %vm742, %v608, 0.0
      %v751 = vsel %vm743, %v610, 0.0
      %v752 = vsel %vm742, %v614, 0.0
      %v753 = vsel %vm743, %v616, 0.0
      %v754 = vsel %vm742, %v618, 0.0
      %v755 = vsel %vm743, %v620, 0.0
      %v756 = vsel %vm742, %v624, 0.0
      %v757 = vsel %vm743, %v626, 0.0
      %v758 = vsel %vm742, %v628, 0.0
      %v759 = vsel %vm743, %v630, 0.0
      %v760 = vsel %vm742, %v634, 0.0
      %v761 = vsel %vm743, %v636, 0.0
      %v762 = vsel %vm742, %v638, 0.0
      %v763 = vsel %vm743, %v640, 0.0
      %v764 = vsel %vm742, %v644, 0.0
      %v765 = vsel %vm743, %v646, 0.0
      %v766 = vsel %vm742, %v648, 0.0
      %v767 = vsel %vm743, %v650, 0.0
      %v768 = vsel %vm742, %v654, 0.0
      %v769 = vsel %vm743, %v656, 0.0
      %v770 = vsel %vm742, %v658, 0.0
      %v771 = vsel %vm743, %v660, 0.0
      %v772 = vsel %vm742, %v664, 0.0
      %v773 = vsel %vm743, %v666, 0.0
      %v774 = vsel %vm742, %v668, 0.0
      %v775 = vsel %vm743, %v670, 0.0
      %v776 = vadd.f32 %v744, %v745
      %777 = vadd.xlane.f32.xlu0 %v776
      %v778 = vpop.xlane.xlu0 %777
      %v779 = vadd.f32 %v746, %v747
      %780 = vadd.xlane.f32.xlu0 %v779
      %v781 = vpop.xlane.xlu0 %780
      %v782 = vadd.f32 %v748, %v749
      %783 = vadd.xlane.f32.xlu0 %v782
      %v784 = vpop.xlane.xlu0 %783
      %v785 = vadd.f32 %v750, %v751
      %786 = vadd.xlane.f32.xlu0 %v785
      %v787 = vpop.xlane.xlu0 %786
      %v788 = vadd.f32 %v752, %v753
      %789 = vadd.xlane.f32.xlu0 %v788
      %v790 = vpop.xlane.xlu0 %789
      %v791 = vadd.f32 %v754, %v755
      %792 = vadd.xlane.f32.xlu0 %v791
      %v793 = vpop.xlane.xlu0 %792
      %v794 = vadd.f32 %v756, %v757
      %795 = vadd.xlane.f32.xlu0 %v794
      %v796 = vpop.xlane.xlu0 %795
      %v797 = vadd.f32 %v758, %v759
      %798 = vadd.xlane.f32.xlu0 %v797
      %v799 = vpop.xlane.xlu0 %798
      %v800 = vadd.f32 %v760, %v761
      %801 = vadd.xlane.f32.xlu0 %v800
      %v802 = vpop.xlane.xlu0 %801
      %v803 = vadd.f32 %v762, %v763
      %804 = vadd.xlane.f32.xlu0 %v803
      %v805 = vpop.xlane.xlu0 %804
      %v806 = vadd.f32 %v764, %v765
      %807 = vadd.xlane.f32.xlu0 %v806
      %v808 = vpop.xlane.xlu0 %807
      %v809 = vadd.f32 %v766, %v767
      %810 = vadd.xlane.f32.xlu0 %v809
      %v811 = vpop.xlane.xlu0 %810
      %v812 = vadd.f32 %v768, %v769
      %813 = vadd.xlane.f32.xlu0 %v812
      %v814 = vpop.xlane.xlu0 %813
      %v815 = vadd.f32 %v770, %v771
      %816 = vadd.xlane.f32.xlu0 %v815
      %v817 = vpop.xlane.xlu0 %816
      %v818 = vadd.f32 %v772, %v773
      %819 = vadd.xlane.f32.xlu0 %v818
      %v820 = vpop.xlane.xlu0 %819
      %v821 = vadd.f32 %v774, %v775
      %822 = vadd.xlane.f32.xlu0 %v821
      %v823 = vpop.xlane.xlu0 %822
      %v824 = vadd.f32 %v724, %v778
      %v825 = vadd.f32 %v725, %v781
      %v826 = vadd.f32 %v726, %v784
      %v827 = vadd.f32 %v727, %v787
      %v828 = vadd.f32 %v728, %v790
      %v829 = vadd.f32 %v729, %v793
      %v830 = vadd.f32 %v730, %v796
      %v831 = vadd.f32 %v731, %v799
      %v832 = vadd.f32 %v732, %v802
      %v833 = vadd.f32 %v733, %v805
      %v834 = vadd.f32 %v734, %v808
      %v835 = vadd.f32 %v735, %v811
      %v836 = vadd.f32 %v736, %v814
      %v837 = vadd.f32 %v737, %v817
      %v838 = vadd.f32 %v738, %v820
      %v839 = vadd.f32 %v739, %v823
      %vm840 = vcmask 7168
      %841 = vst.msk [vmem:[#allocation2] sm:$0xff] %vm840, %v824
      %842 = vst.msk [vmem:[#allocation2 + $0x8] sm:$0xff] %vm840, %v825
      %843 = vst.msk [vmem:[#allocation2 + $0x10] sm:$0xff] %vm840, %v826
      %844 = vst.msk [vmem:[#allocation2 + $0x18] sm:$0xff] %vm840, %v827
      %845 = vst.msk [vmem:[#allocation2 + $0x20] sm:$0xff] %vm840, %v828
      %846 = vst.msk [vmem:[#allocation2 + $0x28] sm:$0xff] %vm840, %v829
      %847 = vst.msk [vmem:[#allocation2 + $0x30] sm:$0xff] %vm840, %v830
      %848 = vst.msk [vmem:[#allocation2 + $0x38] sm:$0xff] %vm840, %v831
      %849 = vst.msk [vmem:[#allocation2 + $0x40] sm:$0xff] %vm840, %v832
      %850 = vst.msk [vmem:[#allocation2 + $0x48] sm:$0xff] %vm840, %v833
      %851 = vst.msk [vmem:[#allocation2 + $0x50] sm:$0xff] %vm840, %v834
      %852 = vst.msk [vmem:[#allocation2 + $0x58] sm:$0xff] %vm840, %v835
      %853 = vst.msk [vmem:[#allocation2 + $0x60] sm:$0xff] %vm840, %v836
      %854 = vst.msk [vmem:[#allocation2 + $0x68] sm:$0xff] %vm840, %v837
      %855 = vst.msk [vmem:[#allocation2 + $0x70] sm:$0xff] %vm840, %v838
      %856 = vst.msk [vmem:[#allocation2 + $0x78] sm:$0xff] %vm840, %v839
      // Predicated region
      $region45: #{_lambda_.1} parent=39 // pred_check
        %p857 = pneg %p694
      $region46: #{_lambda_.1} parent=39 // pred_check_branch
        %859 = sbr.rel (%p857) target = $region48
      $region47: #{_lambda_.1} parent=39 // pred_region
        %v860 = vld [vmem:[#allocation2] sm:$0xff]
        %v861 = vld [vmem:[#allocation2 + $0x8] sm:$0xff]
        %v862 = vld [vmem:[#allocation2 + $0x10] sm:$0xff]
        %v863 = vld [vmem:[#allocation2 + $0x18] sm:$0xff]
        %v864 = vld [vmem:[#allocation2 + $0x20] sm:$0xff]
        %v865 = vld [vmem:[#allocation2 + $0x28] sm:$0xff]
        %v866 = vld [vmem:[#allocation2 + $0x30] sm:$0xff]
        %v867 = vld [vmem:[#allocation2 + $0x38] sm:$0xff]
        %v868 = vld [vmem:[#allocation2 + $0x40] sm:$0xff]
        %v869 = vld [vmem:[#allocation2 + $0x48] sm:$0xff]
        %v870 = vld [vmem:[#allocation2 + $0x50] sm:$0xff]
        %v871 = vld [vmem:[#allocation2 + $0x58] sm:$0xff]
        %v872 = vld [vmem:[#allocation2 + $0x60] sm:$0xff]
        %v873 = vld [vmem:[#allocation2 + $0x68] sm:$0xff]
        %v874 = vld [vmem:[#allocation2 + $0x70] sm:$0xff]
        %v875 = vld [vmem:[#allocation2 + $0x78] sm:$0xff]
        %v876 = vmul.f32 %v860, 0.00390625
        %v877 = vmul.f32 %v861, 0.00390625
        %v878 = vmul.f32 %v862, 0.00390625
        %v879 = vmul.f32 %v863, 0.00390625
        %v880 = vmul.f32 %v864, 0.00390625
        %v881 = vmul.f32 %v865, 0.00390625
        %v882 = vmul.f32 %v866, 0.00390625
        %v883 = vmul.f32 %v867, 0.00390625
        %v884 = vmul.f32 %v868, 0.00390625
        %v885 = vmul.f32 %v869, 0.00390625
        %v886 = vmul.f32 %v870, 0.00390625
        %v887 = vmul.f32 %v871, 0.00390625
        %v888 = vmul.f32 %v872, 0.00390625
        %v889 = vmul.f32 %v873, 0.00390625
        %v890 = vmul.f32 %v874, 0.00390625
        %v891 = vmul.f32 %v875, 0.00390625
        %v892 = vld [vmem:[%s3] sm:$0xff]
        %v893 = vld [vmem:[%s3 + $0x8] sm:$0xff]
        %v894 = vld [vmem:[%s3 + $0x10] sm:$0xff]
        %v895 = vld [vmem:[%s3 + $0x18] sm:$0xff]
        %v896 = vld [vmem:[%s3 + $0x20] sm:$0xff]
        %v897 = vld [vmem:[%s3 + $0x28] sm:$0xff]
        %v898 = vld [vmem:[%s3 + $0x30] sm:$0xff]
        %v899 = vld [vmem:[%s3 + $0x38] sm:$0xff]
        %v900 = vld [vmem:[%s3 + $0x40] sm:$0xff]
        %v901 = vld [vmem:[%s3 + $0x48] sm:$0xff]
        %v902 = vld [vmem:[%s3 + $0x50] sm:$0xff]
        %v903 = vld [vmem:[%s3 + $0x58] sm:$0xff]
        %v904 = vld [vmem:[%s3 + $0x60] sm:$0xff]
        %v905 = vld [vmem:[%s3 + $0x68] sm:$0xff]
        %v906 = vld [vmem:[%s3 + $0x70] sm:$0xff]
        %v907 = vld [vmem:[%s3 + $0x78] sm:$0xff]
        %v908 = vmul.f32 %v876, %v892
        %v909 = vmul.f32 %v877, %v893
        %v910 = vmul.f32 %v878, %v894
        %v911 = vmul.f32 %v879, %v895
        %v912 = vmul.f32 %v880, %v896
        %v913 = vmul.f32 %v881, %v897
        %v914 = vmul.f32 %v882, %v898
        %v915 = vmul.f32 %v883, %v899
        %v916 = vmul.f32 %v884, %v900
        %v917 = vmul.f32 %v885, %v901
        %v918 = vmul.f32 %v886, %v902
        %v919 = vmul.f32 %v887, %v903
        %v920 = vmul.f32 %v888, %v904
        %v921 = vmul.f32 %v889, %v905
        %v922 = vmul.f32 %v890, %v906
        %v923 = vmul.f32 %v891, %v907
        %v924 = vsel %vm840, %v908, 0.0
        %v925 = vsel %vm840, %v909, 0.0
        %v926 = vadd.f32 %v924, %v925
        %v927 = vsel %vm840, %v910, 0.0
        %v928 = vadd.f32 %v926, %v927
        %v929 = vsel %vm840, %v911, 0.0
        %v930 = vadd.f32 %v928, %v929
        %v931 = vsel %vm840, %v912, 0.0
        %v932 = vadd.f32 %v930, %v931
        %v933 = vsel %vm840, %v913, 0.0
        %v934 = vadd.f32 %v932, %v933
        %v935 = vsel %vm840, %v914, 0.0
        %v936 = vadd.f32 %v934, %v935
        %v937 = vsel %vm840, %v915, 0.0
        %v938 = vadd.f32 %v936, %v937
        %v939 = vsel %vm840, %v916, 0.0
        %v940 = vadd.f32 %v938, %v939
        %v941 = vsel %vm840, %v917, 0.0
        %v942 = vadd.f32 %v940, %v941
        %v943 = vsel %vm840, %v918, 0.0
        %v944 = vadd.f32 %v942, %v943
        %v945 = vsel %vm840, %v919, 0.0
        %v946 = vadd.f32 %v944, %v945
        %v947 = vsel %vm840, %v920, 0.0
        %v948 = vadd.f32 %v946, %v947
        %v949 = vsel %vm840, %v921, 0.0
        %v950 = vadd.f32 %v948, %v949
        %v951 = vsel %vm840, %v922, 0.0
        %v952 = vadd.f32 %v950, %v951
        %v953 = vsel %vm840, %v923, 0.0
        %v954 = vadd.f32 %v952, %v953
        %v955 = vrot.slane %v954, 4
        %v956 = vadd.f32 %v954, %v955
        %v957 = vrot.slane %v956, 2
        %v958 = vadd.f32 %v956, %v957
        %v959 = vrot.slane %v958, 1
        %v960 = vadd.f32 %v958, %v959
        %v961 = vld [vmem:[#allocation3] sm:$0x1]
        %v962 = vadd.f32 %v960, %v961
        %v963 = vsub.f32 0.0, %v962
        %v964 = vmul.f32 %v963, 1.442695
        %v965 = vpow.pop %v964
        %v966 = vadd.f32 %v965, 1.0
        %v967 = vrcp.pop %v966
        %v968 = vmul.f32 1.0, %v967
        %vm969 = vcmask 0
        %970 = vst.msk [vmem:[%s351] sm:$0x1] %vm969, %v968
      $region48: #{_lambda_.1} parent=39 // pred_fallthru
        _
      %s971 = smul.u32 2, %s26
      %p972 = scmp.lt.s32.totalorder %s25, 1
      %s973 = scalar_select %p972, %s25, 1
      %p974 = scmp.lt.s32.totalorder %s971, 1
      %s975 = scalar_select %p974, %s971, 1
      %s976 = smul.addr %s973, 10
      %s977 = sadd.s32 %s975, %s976
      %s978 = smul.addr %s977, 8
      %s979 = scalar_lea.vmem %s5, %s978
      %s980 = smul.u32 2, %s26
      %p981 = scmp.lt.s32.totalorder %s25, 1
      %s982 = scalar_select %p981, %s25, 1
      %p983 = scmp.lt.s32.totalorder %s980, 1
      %s984 = scalar_select %p983, %s980, 1
      %s985 = smul.addr %s982, 2
      %s986 = sadd.s32 %s984, %s985
      %s987 = smul.addr %s986, 2
      %s988 = scalar_lea.vmem %s6, %s987
      %p989 = scmp.lt.s32.totalorder %s25, 1
      %s990 = scalar_select %p989, %s25, 1
      %s991 = scalar_lea.vmem %s7, %s990
      // Predicated region
      $region49: #{_lambda_.1} parent=39 // pred_check
        %p992 = pneg %p165
      $region50: #{_lambda_.1} parent=39 // pred_check_branch
        %994 = sbr.rel (%p992) target = $region52
      $region51: #{_lambda_.1} parent=39 // pred_region
        %s995 = smul.u32 2, %s26
      $region52: #{_lambda_.1} parent=39 // pred_fallthru
        _
      // Predicated region
      $region53: #{_lambda_.1} parent=39 // pred_check
        %p996 = pneg %p193
      $region54: #{_lambda_.1} parent=39 // pred_check_branch
        %998 = sbr.rel (%p996) target = $region56
      $region55: #{_lambda_.1} parent=39 // pred_region
        %s999 = smul.u32 2, %s26
      $region56: #{_lambda_.1} parent=39 // pred_fallthru
        _
      // Predicated region
      $region57: #{_lambda_.1} parent=39 // pred_check
        %p1000 = pneg %p219
      $region58: #{_lambda_.1} parent=39 // pred_check_branch
        %1002 = sbr.rel (%p1000) target = $region60
      $region59: #{_lambda_.1} parent=39 // pred_region
        _
      $region60: #{_lambda_.1} parent=39 // pred_fallthru
        _
    $region40: #{_lambda_.1} parent=5 // pred_fallthru
      _
    %p1003 = scmp.le.s32.totalorder 2, %s16
    // Predicated region
    $region61: #{_lambda_.1} parent=5 // pred_check
      %p1004 = pneg %p1003
    $region62: #{_lambda_.1} parent=5 // pred_check_branch
      %1006 = sbr.rel (%p1004) target = $region64
    $region63: #{_lambda_.1} parent=5 // pred_region
      %s1007 = ssub.s32 %s16, 2
      // Predicated region
      $region65: #{_lambda_.1} parent=63 // pred_check
        %p1008 = pneg %p171
      $region66: #{_lambda_.1} parent=63 // pred_check_branch
        %1010 = sbr.rel (%p1008) target = $region68
      $region67: #{_lambda_.1} parent=63 // pred_region
        %s1011 = smul.u32 2, %s28
        %p1012 = scmp.lt.s32.totalorder %s27, 1
        %s1013 = scalar_select %p1012, %s27, 1
        %p1014 = scmp.lt.s32.totalorder %s1011, 1
        %s1015 = scalar_select %p1014, %s1011, 1
        %s1016 = smul.addr %s1013, 10
        %s1017 = sadd.s32 %s1015, %s1016
        %s1018 = smul.addr %s1017, 8
        %s1019 = scalar_lea.vmem %s5, %s1018
      $region68: #{_lambda_.1} parent=63 // pred_fallthru
        _
      // Predicated region
      $region69: #{_lambda_.1} parent=63 // pred_check
        %p1020 = pneg %p199
      $region70: #{_lambda_.1} parent=63 // pred_check_branch
        %1022 = sbr.rel (%p1020) target = $region72
      $region71: #{_lambda_.1} parent=63 // pred_region
        %s1023 = smul.u32 2, %s28
        %p1024 = scmp.lt.s32.totalorder %s27, 1
        %s1025 = scalar_select %p1024, %s27, 1
        %p1026 = scmp.lt.s32.totalorder %s1023, 1
        %s1027 = scalar_select %p1026, %s1023, 1
        %s1028 = smul.addr %s1025, 2
        %s1029 = sadd.s32 %s1027, %s1028
        %s1030 = smul.addr %s1029, 2
        %s1031 = scalar_lea.vmem %s6, %s1030
      $region72: #{_lambda_.1} parent=63 // pred_fallthru
        _
      // Predicated region
      $region73: #{_lambda_.1} parent=63 // pred_check
        %p1032 = pneg %p225
      $region74: #{_lambda_.1} parent=63 // pred_check_branch
        %1034 = sbr.rel (%p1032) target = $region76
      $region75: #{_lambda_.1} parent=63 // pred_region
        %p1035 = scmp.lt.s32.totalorder %s27, 1
        %s1036 = scalar_select %p1035, %s27, 1
        %s1037 = scalar_lea.vmem %s7, %s1036
      $region76: #{_lambda_.1} parent=63 // pred_fallthru
        _
    $region64: #{_lambda_.1} parent=5 // pred_fallthru
      _
  $region6: #{_lambda_.1} parent=0 // loop_footer
    %s20 = sadd.s32 1, %s16
  $region7: #{_lambda_.1} parent=0 // loop_footer_branch
    %15 = sbr.rel target = $region3
  $region8: #{_lambda_.1} parent=0 // loop_exit
    _

</llo_original>
